<compile_context>
chip_gen: v7x
topology: tpu7x:2x2x1
jax: 0.10.0
libtpu: 0.0.40
codegen_flags: <defaults>
</compile_context>

<pallas_src>
import math

import jax
import jax.numpy as jnp
from jax import lax
from jax.experimental import pallas as pl
from jax.experimental.pallas import tpu as pltpu

LANE = 128
SUBLANE = 8


def _round_up(x, m):
    return (x + m - 1) // m * m


def _cdiv(a, b):
    return (a + b - 1) // b


def _pad_to(a, rows, cols):
    r, c = a.shape
    return jnp.pad(a, ((0, rows - r), (0, cols - c)))


# ----------------------------------------------------------------------------
# Activation / norm helpers (used inside the kernel and by the reference)
# ----------------------------------------------------------------------------
def _apply_activation(name, x, approx_gelu=False):
    if name == "tanh":
        return jnp.tanh(x)
    if name == "relu":
        return jnp.maximum(x, 0.0)
    if name == "gelu":
        if approx_gelu:
            # tanh-approx GELU lowers to the EUP (near-free next to MXU work)
            # but is NOT bit-parity with torch.nn.GELU(); off by default.
            c = math.sqrt(2.0 / math.pi)
            return 0.5 * x * (1.0 + jnp.tanh(c * (x + 0.044715 * x * x * x)))
        return 0.5 * x * (1.0 + lax.erf(x * (1.0 / math.sqrt(2.0))))
    raise ValueError(f"unknown activation {name!r}")


def _layernorm(x, gamma, beta, eps=1e-5):
    mean = jnp.mean(x, axis=-1, keepdims=True)
    var = jnp.mean((x - mean) ** 2, axis=-1, keepdims=True)
    return (x - mean) * lax.rsqrt(var + eps) * gamma + beta


def _layernorm_padded(x, gamma, beta, true_dim, mask_cache, eps=1e-5):
    """LayerNorm over a lane-padded tensor.  Padded lanes of `x` are exactly 0
    (zero-padded weights/biases) and gamma/beta are zero-padded, so padded
    lanes stay 0 after normalisation.  The lane mask is cached per
    (shape, true_dim) so the iota/compare is emitted only once per trace."""
    dp = x.shape[-1]
    inv_n = 1.0 / float(true_dim)
    mean = jnp.sum(x, axis=-1, keepdims=True) * inv_n
    diff = x - mean
    if dp != true_dim:
        key = (x.shape, true_dim)
        if key not in mask_cache:
            lane = lax.broadcasted_iota(jnp.int32, x.shape, x.ndim - 1)
            mask_cache[key] = lane < true_dim
        diff = jnp.where(mask_cache[key], diff, 0.0)
    var = jnp.sum(diff * diff, axis=-1, keepdims=True) * inv_n
    return (x - mean) * lax.rsqrt(var + eps) * gamma + beta


# ----------------------------------------------------------------------------
# Fused multi-head kernel
# ----------------------------------------------------------------------------
def _build_fused_kernel(head_meta, approx_gelu=False):
    """head_meta[h]: dict(activations, normalisations, hidden_dims, off0, pd0).
    Param refs (grid-invariant, fully VMEM-resident):
        [w0_cat, b0_cat, <per-head hidden-layer params...>, wout_blk, bout_cat]
    Single output ref: (tile, Cp_total) f32 logits slab (all heads concat)."""

    def kernel(x_ref, w0_ref, b0_ref, *refs):
        out_ref = refs[-1]
        wout_ref, bout_ref = refs[-3], refs[-2]
        mid_refs = refs[:-3]

        mask_cache = {}
        x = x_ref[...].astype(jnp.bfloat16)            # (tile, Dp_in)

        # One wide matmul for every head's first Linear layer.
        h0 = jnp.dot(x, w0_ref[...],
                     preferred_element_type=jnp.float32) + b0_ref[...]

        last_hidden = []
        p = 0
        for meta in head_meta:
            acts = meta["activations"]
            norms = meta["normalisations"]
            hdims = meta["hidden_dims"]
            off0, pd0 = meta["off0"], meta["pd0"]

            # Layer 0: lane-aligned static slice of the shared wide matmul.
            # (Dropout is identity in eval/inference mode.)
            cur = _apply_activation(acts[0], h0[:, off0:off0 + pd0], approx_gelu)

            # Hidden layers 1..L-1 (Linear -> Dropout(id) -> Norm -> Act).
            for li in range(1, len(acts)):
                w = mid_refs[p][...]
                b = mid_refs[p + 1][...]
                p += 2
                y = jnp.dot(cur.astype(jnp.bfloat16), w,
                            preferred_element_type=jnp.float32) + b
                if norms[li - 1] == "layer":
                    gamma = mid_refs[p][...]
                    beta = mid_refs[p + 1][...]
                    p += 2
                    y = _layernorm_padded(y, gamma, beta, hdims[li], mask_cache)
                cur = _apply_activation(acts[li], y, approx_gelu)

            last_hidden.append(cur.astype(jnp.bfloat16))

        # One block-diagonal matmul for every head's out_proj, writing a single
        # lane-dense logits slab (cross blocks of wout are zero).
        hid_all = (last_hidden[0] if len(last_hidden) == 1
                   else jnp.concatenate(last_hidden, axis=-1))
        out_ref[...] = (jnp.dot(hid_all, wout_ref[...],
                                preferred_element_type=jnp.float32)
                        + bout_ref[...])

    return kernel


# ----------------------------------------------------------------------------
# Parameter packing (layer-0 concat + block-diagonal out_proj, lane-dense)
# ----------------------------------------------------------------------------
def pack_fused_params(all_params, all_specs, input_dim):
    """Pack per-head unpadded f32 params into the fused/padded kernel layout.
    Weights -> bf16, biases/gamma/beta -> f32; padding is zeros everywhere."""
    Dp_in = _round_up(input_dim, LANE)

    head_meta = []
    off0 = rowoff = coloff = 0
    for params, spec in zip(all_params, all_specs):
        acts = list(spec["activations"])
        norms = list(spec["normalisations"])
        hdims = list(spec["linear_layers_dim"][: len(acts)])
        nc = int(spec["num_classes"])
        for nt in norms:
            if nt == "batch":
                raise NotImplementedError(
                    "BatchNorm1d ('batch') normalisation is not supported")
        pdims = [Dp_in] + [_round_up(d, LANE) for d in hdims]
        head_meta.append(dict(
            activations=acts, normalisations=norms, hidden_dims=hdims,
            num_classes=nc, pdims=pdims, pd0=pdims[1], pdlast=pdims[-1],
            off0=off0, rowoff=rowoff, coloff=coloff))
        off0 += pdims[1]
        rowoff += pdims[-1]
        coloff += nc

    W0_total, Rout_total, C_total = off0, rowoff, coloff
    Cp_total = _round_up(C_total, LANE)

    w0_cat = jnp.zeros((Dp_in, W0_total), jnp.float32)
    b0_cat = jnp.zeros((1, W0_total), jnp.float32)
    wout_blk = jnp.zeros((Rout_total, Cp_total), jnp.float32)
    bout_cat = jnp.zeros((1, Cp_total), jnp.float32)

    mid_params = []
    for params, meta in zip(all_params, head_meta):
        acts, norms = meta["activations"], meta["normalisations"]
        pdims, nc = meta["pdims"], meta["num_classes"]
        idx = 0
        # Layer 0 -> concatenated W0 / b0.
        w0, b0 = params[idx], params[idx + 1]
        idx += 2
        o = meta["off0"]
        w0_cat = w0_cat.at[: w0.shape[0], o:o + w0.shape[1]].set(w0)
        b0_cat = b0_cat.at[:, o:o + b0.shape[1]].set(b0)
        # Hidden layers 1..L-1 (kept per-head, lane-padded).
        for li in range(1, len(acts)):
            w, b = params[idx], params[idx + 1]
            idx += 2
            mid_params.append(_pad_to(w, pdims[li], pdims[li + 1]).astype(jnp.bfloat16))
            mid_params.append(_pad_to(b, 1, pdims[li + 1]).astype(jnp.float32))
            if norms[li - 1] == "layer":
                g, be = params[idx], params[idx + 1]
                idx += 2
                mid_params.append(_pad_to(g, 1, pdims[li + 1]).astype(jnp.float32))
                mid_params.append(_pad_to(be, 1, pdims[li + 1]).astype(jnp.float32))
        # out_proj -> block-diagonal slab.
        w_out, b_out = params[idx], params[idx + 1]
        r, c = meta["rowoff"], meta["coloff"]
        wout_blk = wout_blk.at[r:r + w_out.shape[0], c:c + nc].set(w_out)
        bout_cat = bout_cat.at[:, c:c + nc].set(b_out)

    flat = [w0_cat.astype(jnp.bfloat16), b0_cat,
            *mid_params,
            wout_blk.astype(jnp.bfloat16), bout_cat]
    dims = dict(Dp_in=Dp_in, W0_total=W0_total, Rout_total=Rout_total,
                C_total=C_total, Cp_total=Cp_total)
    return flat, head_meta, dims


# ----------------------------------------------------------------------------
# Forward: one fused pallas_call for ALL sub-heads
# ----------------------------------------------------------------------------
def multi_tagging_forward(features, all_params, all_specs, *, token_tile=512,
                          approx_gelu=False, vmem_limit_bytes=None):
    """features: (batch, seq, input_dim) f32
    all_params[h]: flat unpadded f32 param list for head h (torch order)
    all_specs[h]:  dict(activations, normalisations, num_classes, linear_layers_dim)
    Returns list of (batch, seq, num_classes_h) f32 logits."""
    B, S, D_in = features.shape
    N = B * S

    flat_params, head_meta, dims = pack_fused_params(all_params, all_specs, D_in)
    Dp_in, Cp_total = dims["Dp_in"], dims["Cp_total"]

    # Token tiling: large tiles amortise per-step overhead; prefer >= 2 grid
    # steps (megacore / v7x dual-TC sharding) when there is enough work.
    tile = max(SUBLANE, _round_up(min(token_tile, N), SUBLANE))
    if _cdiv(N, tile) < 2 and N >= 2 * LANE:
        tile = _round_up(_cdiv(N, 2), SUBLANE)
    N_pad = _round_up(N, tile)

    # Features stay f32 in HBM (kernel casts to bf16 in VMEM); pad only when
    # the shapes actually need it (RoBERTa dims 768/1024 need no lane pad).
    x2d = features.reshape(N, D_in)
    if N_pad != N or Dp_in != D_in:
        x2d = jnp.pad(x2d, ((0, N_pad - N), (0, Dp_in - D_in)))

    kernel = _build_fused_kernel(head_meta, approx_gelu=approx_gelu)

    # Pipelined feature tiles; grid-invariant params fully resident in VMEM
    # (single copy, no double-buffering).
    in_specs = [pl.BlockSpec((tile, Dp_in), lambda i: (i, 0))]
    param_spec = pl.BlockSpec(memory_space=pltpu.MemorySpace.VMEM)
    in_specs.extend([param_spec] * len(flat_params))

    out_shape = jax.ShapeDtypeStruct((N_pad, Cp_total), jnp.float32)
    out_spec = pl.BlockSpec((tile, Cp_total), lambda i: (i, 0))

    # Cost estimate for XLA scheduling.
    flops = 2 * N_pad * Dp_in * dims["W0_total"]
    transcendentals = 0
    mid_width = 0
    for meta in head_meta:
        pdims = meta["pdims"]
        for li in range(1, len(meta["activations"])):
            flops += 2 * N_pad * pdims[li] * pdims[li + 1]
            mid_width = max(mid_width, pdims[li] + pdims[li + 1])
        for act, w in zip(meta["activations"], pdims[1:]):
            if act in ("tanh", "gelu"):
                transcendentals += N_pad * w
    flops += 2 * N_pad * dims["Rout_total"] * Cp_total
    bytes_accessed = int(x2d.size) * 4 + N_pad * Cp_total * 4
    param_bytes = 0
    for p_arr in flat_params:
        param_bytes += int(p_arr.size) * p_arr.dtype.itemsize
    bytes_accessed += param_bytes

    # VMEM budget: 2x pipelined input tile + 2x output tile + resident params
    # + per-layer f32 intermediates; clamp to 64 MiB (v7x physical ceiling).
    if vmem_limit_bytes is None:
        est = (2 * tile * Dp_in * 4 + 2 * tile * Cp_total * 4 + param_bytes
               + tile * (dims["W0_total"] + dims["Rout_total"] + mid_width) * 4)
        vmem_limit_bytes = min(max(2 * est, 32 * 1024 * 1024), 64 * 1024 * 1024)

    out_padded = pl.pallas_call(
        kernel,
        out_shape=out_shape,
        grid_spec=pltpu.PrefetchScalarGridSpec(
            num_scalar_prefetch=0,
            grid=(N_pad // tile,),
            in_specs=in_specs,
            out_specs=out_spec,
        ),
        compiler_params=pltpu.CompilerParams(
            dimension_semantics=("parallel",),
            vmem_limit_bytes=int(vmem_limit_bytes),
        ),
        cost_estimate=pl.CostEstimate(
            flops=int(flops),
            transcendentals=int(transcendentals),
            bytes_accessed=int(bytes_accessed),
        ),
    )(x2d, *flat_params)

    # NOTE: padded token rows [N, N_pad) of the slab hold bias values; they are
    # sliced off here and must not be consumed directly.
    results = []
    for meta in head_meta:
        c0, nc = meta["coloff"], meta["num_classes"]
        results.append(out_padded[:N, c0:c0 + nc].reshape(B, S, nc))
    return results


# ----------------------------------------------------------------------------
# Deterministic parameter construction (mirrors the torch __init__ shapes)
# ----------------------------------------------------------------------------
def init_head_params(key, input_dim, linear_layers_dim, num_linear_layers,
                     normalisations, num_classes):
    """Flat UNPADDED f32 params in kernel order:
    [w, b, (gamma, beta)?, ..., w_out, b_out]; weights are (in, out)."""
    params = []
    dims = [input_dim] + list(linear_layers_dim[:num_linear_layers])
    for li in range(num_linear_layers):
        key, kw, kb = jax.random.split(key, 3)
        d_in, d_out = dims[li], dims[li + 1]
        w = jax.random.normal(kw, (d_in, d_out), jnp.float32) * 0.05
        b = jax.random.normal(kb, (1, d_out), jnp.float32) * 0.05
        params += [w, b]
        if li > 0 and normalisations[li - 1] == "layer":
            key, kg = jax.random.split(key)
            gamma = 1.0 + 0.1 * jax.random.normal(kg, (1, d_out), jnp.float32)
            beta = jnp.zeros((1, d_out), jnp.float32)
            params += [gamma, beta]
    key, kw, kb = jax.random.split(key, 3)
    w_out = jax.random.normal(kw, (dims[-1], num_classes), jnp.float32) * 0.05
    b_out = jax.random.normal(kb, (1, num_classes), jnp.float32) * 0.05
    params += [w_out, b_out]
    return params


# ----------------------------------------------------------------------------
# Pure-JAX reference (same bf16 matmul operands, f32 accumulation / pointwise)
# ----------------------------------------------------------------------------
def head_reference(features, params_f32, spec):
    x = features.astype(jnp.float32)
    acts = spec["activations"]
    norms = spec["normalisations"]
    idx = 0
    for li, act in enumerate(acts):
        w, b = params_f32[idx], params_f32[idx + 1]
        idx += 2
        x = jnp.dot(x.astype(jnp.bfloat16), w.astype(jnp.bfloat16),
                    preferred_element_type=jnp.float32) + b
        if li > 0 and norms[li - 1] == "layer":
            gamma, beta = params_f32[idx], params_f32[idx + 1]
            idx += 2
            x = _layernorm(x, gamma, beta)
        x = _apply_activation(act, x)
    w_out, b_out = params_f32[idx], params_f32[idx + 1]
    return jnp.dot(x.astype(jnp.bfloat16), w_out.astype(jnp.bfloat16),
                   preferred_element_type=jnp.float32) + b_out


if __name__ == "__main__":
    # Small shapes consistent with the module's forward (token-level features).
    BATCH, SEQ, INPUT_DIM = 2, 8, 32

    # Synthetic "config.hyperparams": two targets / two sub-heads.
    head_configs = [
        dict(  # target_a: 2 linear layers, LayerNorm on 2nd, tanh -> gelu
            num_classes=5,
            num_linear_layers=2,
            linear_layers_dim=[64, 64],
            activations=["tanh", "gelu"],
            normalisations=["layer"],
        ),
        dict(  # target_b: 1 linear layer, relu
            num_classes=7,
            num_linear_layers=1,
            linear_layers_dim=[48],
            activations=["relu"],
            normalisations=[],
        ),
    ]

    key = jax.random.PRNGKey(0)
    key, kf = jax.random.split(key)
    features = jax.random.normal(kf, (BATCH, SEQ, INPUT_DIM), jnp.float32)

    all_params, all_specs = [], []
    for hc in head_configs:
        key, kh = jax.random.split(key)
        params = init_head_params(
            kh,
            input_dim=INPUT_DIM,
            linear_layers_dim=hc["linear_layers_dim"],
            num_linear_layers=hc["num_linear_layers"],
            normalisations=hc["normalisations"],
            num_classes=hc["num_classes"],
        )
        all_params.append(params)
        all_specs.append(
            dict(
                activations=hc["activations"],
                normalisations=hc["normalisations"],
                num_classes=hc["num_classes"],
                linear_layers_dim=hc["linear_layers_dim"],
            )
        )

    outs = multi_tagging_forward(features, all_params, all_specs)
    outs = jax.block_until_ready(outs)

    # Verify against the pure-JAX reference (same bf16 matmul operands).
    for out, params, spec in zip(outs, all_params, all_specs):
        ref = head_reference(features, params, spec)
        assert out.shape == ref.shape, (out.shape, ref.shape)
        assert jnp.allclose(out, ref, atol=2e-3, rtol=2e-3), "mismatch vs reference"

    print("KERNEL_OK")
</pallas_src>

<mosaic_0001>
module attributes {stable_mosaic.version = 11 : i64} {
  func.func @kernel(%arg0: i32, %arg1: memref<16x128xf32, #tpu.memory_space<vmem>>, %arg2: memref<128x256xbf16, #tpu.memory_space<vmem>>, %arg3: memref<1x256xf32, #tpu.memory_space<vmem>>, %arg4: memref<128x128xbf16, #tpu.memory_space<vmem>>, %arg5: memref<1x128xf32, #tpu.memory_space<vmem>>, %arg6: memref<1x128xf32, #tpu.memory_space<vmem>>, %arg7: memref<1x128xf32, #tpu.memory_space<vmem>>, %arg8: memref<256x128xbf16, #tpu.memory_space<vmem>>, %arg9: memref<1x128xf32, #tpu.memory_space<vmem>>, %arg10: memref<16x128xf32, #tpu.memory_space<vmem>>) attributes {dimension_semantics = [#tpu.dimension_semantics<parallel>], iteration_bounds = array<i64: 1>, scalar_prefetch = 0 : i64, scratch_operands = 0 : i64, tpu.core_type = #tpu.core_type<tc>, window_params = [{transform_indices = @transform_0, window_bounds = array<i64: 16, 128>}, {pipeline_mode = #tpu.pipeline_mode<synchronous>, transform_indices = @transform_1, window_bounds = array<i64: 128, 256>}, {pipeline_mode = #tpu.pipeline_mode<synchronous>, transform_indices = @transform_2, window_bounds = array<i64: 1, 256>}, {pipeline_mode = #tpu.pipeline_mode<synchronous>, transform_indices = @transform_3, window_bounds = array<i64: 128, 128>}, {pipeline_mode = #tpu.pipeline_mode<synchronous>, transform_indices = @transform_4, window_bounds = array<i64: 1, 128>}, {pipeline_mode = #tpu.pipeline_mode<synchronous>, transform_indices = @transform_5, window_bounds = array<i64: 1, 128>}, {pipeline_mode = #tpu.pipeline_mode<synchronous>, transform_indices = @transform_6, window_bounds = array<i64: 1, 128>}, {pipeline_mode = #tpu.pipeline_mode<synchronous>, transform_indices = @transform_7, window_bounds = array<i64: 256, 128>}, {pipeline_mode = #tpu.pipeline_mode<synchronous>, transform_indices = @transform_8, window_bounds = array<i64: 1, 128>}, {transform_indices = @transform_9, window_bounds = array<i64: 16, 128>}]} {
    %c0 = arith.constant 0 : index
    %c0_0 = arith.constant 0 : index
    %0 = vector.load %arg1[%c0, %c0_0] : memref<16x128xf32, #tpu.memory_space<vmem>>, vector<16x128xf32>
    %1 = arith.truncf %0 : vector<16x128xf32> to vector<16x128xbf16>
    %c0_1 = arith.constant 0 : index
    %c0_2 = arith.constant 0 : index
    %2 = vector.load %arg2[%c0_1, %c0_2] : memref<128x256xbf16, #tpu.memory_space<vmem>>, vector<128x256xbf16>
    %cst = arith.constant dense<0.000000e+00> : vector<16x256xf32>
    %3 = tpu.matmul %1, %2, %cst {dimension_numbers = #tpu.dot_dimension_numbers<[1], [0], [0], [1], [0, 0, 1, 1], [], []>} : vector<16x128xbf16>, vector<128x256xbf16>, vector<16x256xf32> -> vector<16x256xf32>
    %c0_3 = arith.constant 0 : index
    %c0_4 = arith.constant 0 : index
    %4 = vector.load %arg3[%c0_3, %c0_4] : memref<1x256xf32, #tpu.memory_space<vmem>>, vector<1x256xf32>
    %5 = vector.broadcast %4 : vector<1x256xf32> to vector<16x256xf32>
    %6 = arith.addf %3, %5 : vector<16x256xf32>
    %7 = vector.extract_strided_slice %6 {offsets = [0, 0], sizes = [16, 128], strides = [1, 1]} : vector<16x256xf32> to vector<16x128xf32>
    %8 = math.tanh %7 : vector<16x128xf32>
    %c0_5 = arith.constant 0 : index
    %c0_6 = arith.constant 0 : index
    %9 = vector.load %arg4[%c0_5, %c0_6] : memref<128x128xbf16, #tpu.memory_space<vmem>>, vector<128x128xbf16>
    %c0_7 = arith.constant 0 : index
    %c0_8 = arith.constant 0 : index
    %10 = vector.load %arg5[%c0_7, %c0_8] : memref<1x128xf32, #tpu.memory_space<vmem>>, vector<1x128xf32>
    %11 = arith.truncf %8 : vector<16x128xf32> to vector<16x128xbf16>
    %cst_9 = arith.constant dense<0.000000e+00> : vector<16x128xf32>
    %12 = tpu.matmul %11, %9, %cst_9 {dimension_numbers = #tpu.dot_dimension_numbers<[1], [0], [0], [1], [0, 0, 1, 1], [], []>} : vector<16x128xbf16>, vector<128x128xbf16>, vector<16x128xf32> -> vector<16x128xf32>
    %13 = vector.broadcast %10 : vector<1x128xf32> to vector<16x128xf32>
    %14 = arith.addf %12, %13 : vector<16x128xf32>
    %c0_10 = arith.constant 0 : index
    %c0_11 = arith.constant 0 : index
    %15 = vector.load %arg6[%c0_10, %c0_11] : memref<1x128xf32, #tpu.memory_space<vmem>>, vector<1x128xf32>
    %c0_12 = arith.constant 0 : index
    %c0_13 = arith.constant 0 : index
    %16 = vector.load %arg7[%c0_12, %c0_13] : memref<1x128xf32, #tpu.memory_space<vmem>>, vector<1x128xf32>
    %cst_14 = arith.constant dense<0.000000e+00> : vector<16xf32>
    %17 = vector.multi_reduction <add>, %14, %cst_14 [1] : vector<16x128xf32> to vector<16xf32>
    %18 = vector.shape_cast %17 : vector<16xf32> to vector<16x1xf32>
    %cst_15 = arith.constant 1.562500e-02 : f32
    %19 = vector.broadcast %cst_15 : f32 to vector<16x1xf32>
    %20 = arith.mulf %18, %19 : vector<16x1xf32>
    %21 = vector.broadcast %20 : vector<16x1xf32> to vector<16x128xf32>
    %22 = arith.subf %14, %21 : vector<16x128xf32>
    %23 = tpu.iota {dimensions = array<i32: 1>} : vector<16x128xi32>
    %c64_i32 = arith.constant 64 : i32
    %24 = vector.broadcast %c64_i32 : i32 to vector<16x128xi32>
    %25 = arith.cmpi slt, %23, %24 : vector<16x128xi32>
    %cst_16 = arith.constant 0.000000e+00 : f32
    %26 = vector.broadcast %cst_16 : f32 to vector<16x128xf32>
    %27 = arith.select %25, %22, %26 : vector<16x128xi1>, vector<16x128xf32>
    %28 = arith.mulf %27, %27 : vector<16x128xf32>
    %cst_17 = arith.constant dense<0.000000e+00> : vector<16xf32>
    %29 = vector.multi_reduction <add>, %28, %cst_17 [1] : vector<16x128xf32> to vector<16xf32>
    %30 = vector.shape_cast %29 : vector<16xf32> to vector<16x1xf32>
    %cst_18 = arith.constant 1.562500e-02 : f32
    %31 = vector.broadcast %cst_18 : f32 to vector<16x1xf32>
    %32 = arith.mulf %30, %31 : vector<16x1xf32>
    %33 = vector.broadcast %20 : vector<16x1xf32> to vector<16x128xf32>
    %34 = arith.subf %14, %33 : vector<16x128xf32>
    %cst_19 = arith.constant 9.99999974E-6 : f32
    %35 = vector.broadcast %cst_19 : f32 to vector<16x1xf32>
    %36 = arith.addf %32, %35 : vector<16x1xf32>
    %37 = math.rsqrt %36 : vector<16x1xf32>
    %38 = vector.broadcast %37 : vector<16x1xf32> to vector<16x128xf32>
    %39 = arith.mulf %34, %38 : vector<16x128xf32>
    %40 = vector.broadcast %15 : vector<1x128xf32> to vector<16x128xf32>
    %41 = arith.mulf %39, %40 : vector<16x128xf32>
    %42 = vector.broadcast %16 : vector<1x128xf32> to vector<16x128xf32>
    %43 = arith.addf %41, %42 : vector<16x128xf32>
    %cst_20 = arith.constant 5.000000e-01 : f32
    %44 = vector.broadcast %cst_20 : f32 to vector<16x128xf32>
    %45 = arith.mulf %44, %43 : vector<16x128xf32>
    %cst_21 = arith.constant 0.707106769 : f32
    %46 = vector.broadcast %cst_21 : f32 to vector<16x128xf32>
    %47 = arith.mulf %43, %46 : vector<16x128xf32>
    %48 = math.erf %47 : vector<16x128xf32>
    %cst_22 = arith.constant 1.000000e+00 : f32
    %49 = vector.broadcast %cst_22 : f32 to vector<16x128xf32>
    %50 = arith.addf %49, %48 : vector<16x128xf32>
    %51 = arith.mulf %45, %50 : vector<16x128xf32>
    %52 = arith.truncf %51 : vector<16x128xf32> to vector<16x128xbf16>
    %53 = vector.extract_strided_slice %6 {offsets = [0, 128], sizes = [16, 128], strides = [1, 1]} : vector<16x256xf32> to vector<16x128xf32>
    %cst_23 = arith.constant 0.000000e+00 : f32
    %54 = vector.broadcast %cst_23 : f32 to vector<16x128xf32>
    %55 = arith.maximumf %53, %54 : vector<16x128xf32>
    %56 = arith.truncf %55 : vector<16x128xf32> to vector<16x128xbf16>
    %57 = tpu.concatenate %52, %56 in 1 : vector<16x128xbf16>, vector<16x128xbf16> -> vector<16x256xbf16>
    %c0_24 = arith.constant 0 : index
    %c0_25 = arith.constant 0 : index
    %58 = vector.load %arg8[%c0_24, %c0_25] : memref<256x128xbf16, #tpu.memory_space<vmem>>, vector<256x128xbf16>
    %cst_26 = arith.constant dense<0.000000e+00> : vector<16x128xf32>
    %59 = tpu.matmul %57, %58, %cst_26 {dimension_numbers = #tpu.dot_dimension_numbers<[1], [0], [0], [1], [0, 0, 1, 1], [], []>} : vector<16x256xbf16>, vector<256x128xbf16>, vector<16x128xf32> -> vector<16x128xf32>
    %c0_27 = arith.constant 0 : index
    %c0_28 = arith.constant 0 : index
    %60 = vector.load %arg9[%c0_27, %c0_28] : memref<1x128xf32, #tpu.memory_space<vmem>>, vector<1x128xf32>
    %61 = vector.broadcast %60 : vector<1x128xf32> to vector<16x128xf32>
    %62 = arith.addf %59, %61 : vector<16x128xf32>
    %c0_29 = arith.constant 0 : index
    %c0_30 = arith.constant 0 : index
    %63 = vector.load %arg10[%c0_29, %c0_30] : memref<16x128xf32, #tpu.memory_space<vmem>>, vector<16x128xf32>
    tpu.vector_store %arg10[%c0_29, %c0_30], %62 {strides = array<i32>} : memref<16x128xf32, #tpu.memory_space<vmem>>, vector<16x128xf32>,
    return
  }
  func.func @transform_0(%arg0: i32) -> (i32, i32) {
    %c0_i32 = arith.constant 0 : i32
    %c0_i32_0 = arith.constant 0 : i32
    return %arg0, %c0_i32 : i32, i32
  }
  func.func @transform_1(%arg0: i32) -> (i32, i32) {
    %c0_i32 = arith.constant 0 : i32
    %c0_i32_0 = arith.constant 0 : i32
    %c0_i32_1 = arith.constant 0 : i32
    return %c0_i32, %c0_i32_0 : i32, i32
  }
  func.func @transform_2(%arg0: i32) -> (i32, i32) {
    %c0_i32 = arith.constant 0 : i32
    %c0_i32_0 = arith.constant 0 : i32
    %c0_i32_1 = arith.constant 0 : i32
    return %c0_i32, %c0_i32_0 : i32, i32
  }
  func.func @transform_3(%arg0: i32) -> (i32, i32) {
    %c0_i32 = arith.constant 0 : i32
    %c0_i32_0 = arith.constant 0 : i32
    %c0_i32_1 = arith.constant 0 : i32
    return %c0_i32, %c0_i32_0 : i32, i32
  }
  func.func @transform_4(%arg0: i32) -> (i32, i32) {
    %c0_i32 = arith.constant 0 : i32
    %c0_i32_0 = arith.constant 0 : i32
    %c0_i32_1 = arith.constant 0 : i32
    return %c0_i32, %c0_i32_0 : i32, i32
  }
  func.func @transform_5(%arg0: i32) -> (i32, i32) {
    %c0_i32 = arith.constant 0 : i32
    %c0_i32_0 = arith.constant 0 : i32
    %c0_i32_1 = arith.constant 0 : i32
    return %c0_i32, %c0_i32_0 : i32, i32
  }
  func.func @transform_6(%arg0: i32) -> (i32, i32) {
    %c0_i32 = arith.constant 0 : i32
    %c0_i32_0 = arith.constant 0 : i32
    %c0_i32_1 = arith.constant 0 : i32
    return %c0_i32, %c0_i32_0 : i32, i32
  }
  func.func @transform_7(%arg0: i32) -> (i32, i32) {
    %c0_i32 = arith.constant 0 : i32
    %c0_i32_0 = arith.constant 0 : i32
    %c0_i32_1 = arith.constant 0 : i32
    return %c0_i32, %c0_i32_0 : i32, i32
  }
  func.func @transform_8(%arg0: i32) -> (i32, i32) {
    %c0_i32 = arith.constant 0 : i32
    %c0_i32_0 = arith.constant 0 : i32
    %c0_i32_1 = arith.constant 0 : i32
    return %c0_i32, %c0_i32_0 : i32, i32
  }
  func.func @transform_9(%arg0: i32) -> (i32, i32) {
    %c0_i32 = arith.constant 0 : i32
    %c0_i32_0 = arith.constant 0 : i32
    return %arg0, %c0_i32 : i32, i32
  }
}

</mosaic_0001>

<llo_original>
// kernel: tpu_custom_call.1
$region0: #{tpu_custom_call.1}
  #allocation0 [shape = 'u32[]', space=smem, size = 0x4, offset = 0x4, fixed_abs, tag = 'smem constant byte address 0x4 - core index']
  #allocation1 [shape = 'u32[144,128]{1,0:T(1,128)}', space=vmem, size = 0x12000, scoped, tag = 'internal scratch']
  %s0 = inlined_call_operand.hbm [shape: f32[16,128], index: 0, kind: input, shape index: {}]
  %s1 = inlined_call_operand.hbm [shape: bf16[128,256], index: 1, kind: input, shape index: {}]
  %s2 = inlined_call_operand.vmem [shape: f32[1,256], index: 2, kind: input, shape index: {}]
  %s3 = inlined_call_operand.hbm [shape: bf16[128,128], index: 3, kind: input, shape index: {}]
  %s4 = inlined_call_operand.vmem [shape: f32[1,128], index: 4, kind: input, shape index: {}]
  %s5 = inlined_call_operand.vmem [shape: f32[1,128], index: 5, kind: input, shape index: {}]
  %s6 = inlined_call_operand.vmem [shape: f32[1,128], index: 6, kind: input, shape index: {}]
  %s7 = inlined_call_operand.hbm [shape: bf16[256,128], index: 7, kind: input, shape index: {}]
  %s8 = inlined_call_operand.vmem [shape: f32[1,128], index: 8, kind: input, shape index: {}]
  %s9 = inlined_call_operand.hbm [shape: f32[16,128], index: 9, kind: output, shape index: {}]
  %s10 = sld [smem:[#allocation0]]
  $region62: #{tpu_custom_call.1} parent=0
    _
  %s12 = ssub.s32 1, %s10
  %s13 = scalar_select 0, %s12, %s10
  $region1: #{tpu_custom_call.1} parent=0
    #allocation2 [shape = 'u8[8192]{0}', space=vmem, size = 0x2000, scoped, tag = 'input window, operand 0, single buffered']
    #allocation3 [shape = 's32[1]{0}', space=sflag, size = 0x4, scoped, tag = 'scoped memory for tpu_custom_call.1']
    #allocation4 [shape = 's32[1]{0}', space=sflag, size = 0x4, scoped, tag = 'scoped memory for tpu_custom_call.1']
    #allocation5 [shape = 'u8[65536]{0}', space=vmem, size = 0x10000, scoped, tag = 'input window, operand 1, single buffered']
    #allocation6 [shape = 's32[1]{0}', space=sflag, size = 0x4, scoped, tag = 'scoped memory for tpu_custom_call.1']
    #allocation7 [shape = 'u8[32768]{0}', space=vmem, size = 0x8000, scoped, tag = 'input window, operand 3, single buffered']
    #allocation8 [shape = 'u8[65536]{0}', space=vmem, size = 0x10000, scoped, tag = 'input window, operand 7, single buffered']
    #allocation9 [shape = 's32[1]{0}', space=sflag, size = 0x4, scoped, tag = 'scoped memory for tpu_custom_call.1']
    #allocation10 [shape = 'u8[8192]{0}', space=vmem, size = 0x2000, scoped, tag = 'output window, operand 0, single buffered']
    %14 = vsyncpa [#allocation3], 0
    %15 = vsyncpa [#allocation6], 0
    %16 = vsyncpa [#allocation9], 0
    %17 = vsyncpa [#allocation4], 0
    // Predicated region
    $region2: #{tpu_custom_call.1} parent=1 // pred_check
      _
    $region3: #{tpu_custom_call.1} parent=1 // pred_check_branch
      %19 = sbr.rel (0) target = $region5
    $region4: #{tpu_custom_call.1} parent=1 // pred_region
      %s21 = ssub.s32 256, 256
      %22 = vsyncadd [#allocation3], %s21
      %s23 = sshll.u32 [#allocation2], 4
      %s24 = int_to_ptr.vmem [resolvable:$true] %s23
      %29 = dma.hbm_to_vmem [thread:$0]  %s0, 256, %s24, [#allocation3], 128, 128, 8
    $region5: #{tpu_custom_call.1} parent=1 // pred_fallthru
      _
    // Predicated region
    $region6: #{tpu_custom_call.1} parent=1 // pred_check
      _
    $region7: #{tpu_custom_call.1} parent=1 // pred_check_branch
      %31 = sbr.rel (0) target = $region9
    $region8: #{tpu_custom_call.1} parent=1 // pred_region
      %s33 = ssub.s32 2048, 2048
      %34 = vsyncadd [#allocation6], %s33
      %s35 = sshll.u32 [#allocation5], 4
      %s36 = int_to_ptr.vmem [resolvable:$true] %s35
      %41 = dma.hbm_to_vmem [thread:$0]  %s1, 2048, %s36, [#allocation6], 128, 128, 8
    $region9: #{tpu_custom_call.1} parent=1 // pred_fallthru
      _
    // Predicated region
    $region10: #{tpu_custom_call.1} parent=1 // pred_check
      _
    $region11: #{tpu_custom_call.1} parent=1 // pred_check_branch
      %43 = sbr.rel (0) target = $region13
    $region12: #{tpu_custom_call.1} parent=1 // pred_region
      _
    $region13: #{tpu_custom_call.1} parent=1 // pred_fallthru
      _
    // Predicated region
    $region14: #{tpu_custom_call.1} parent=1 // pred_check
      _
    $region15: #{tpu_custom_call.1} parent=1 // pred_check_branch
      %45 = sbr.rel (0) target = $region17
    $region16: #{tpu_custom_call.1} parent=1 // pred_region
      %s47 = ssub.s32 1024, 1024
      %48 = vsyncadd [#allocation6], %s47
      %s49 = sshll.u32 [#allocation7], 4
      %s50 = int_to_ptr.vmem [resolvable:$true] %s49
      %55 = dma.hbm_to_vmem [thread:$0]  %s3, 1024, %s50, [#allocation6], 64, 64, 4
    $region17: #{tpu_custom_call.1} parent=1 // pred_fallthru
      _
    // Predicated region
    $region18: #{tpu_custom_call.1} parent=1 // pred_check
      _
    $region19: #{tpu_custom_call.1} parent=1 // pred_check_branch
      %57 = sbr.rel (0) target = $region21
    $region20: #{tpu_custom_call.1} parent=1 // pred_region
      _
    $region21: #{tpu_custom_call.1} parent=1 // pred_fallthru
      _
    // Predicated region
    $region22: #{tpu_custom_call.1} parent=1 // pred_check
      _
    $region23: #{tpu_custom_call.1} parent=1 // pred_check_branch
      %59 = sbr.rel (0) target = $region25
    $region24: #{tpu_custom_call.1} parent=1 // pred_region
      _
    $region25: #{tpu_custom_call.1} parent=1 // pred_fallthru
      _
    // Predicated region
    $region26: #{tpu_custom_call.1} parent=1 // pred_check
      _
    $region27: #{tpu_custom_call.1} parent=1 // pred_check_branch
      %61 = sbr.rel (0) target = $region29
    $region28: #{tpu_custom_call.1} parent=1 // pred_region
      _
    $region29: #{tpu_custom_call.1} parent=1 // pred_fallthru
      _
    // Predicated region
    $region30: #{tpu_custom_call.1} parent=1 // pred_check
      _
    $region31: #{tpu_custom_call.1} parent=1 // pred_check_branch
      %63 = sbr.rel (0) target = $region33
    $region32: #{tpu_custom_call.1} parent=1 // pred_region
      %s65 = ssub.s32 2048, 2048
      %66 = vsyncadd [#allocation9], %s65
      %s67 = sshll.u32 [#allocation8], 4
      %s68 = int_to_ptr.vmem [resolvable:$true] %s67
      %73 = dma.hbm_to_vmem [thread:$0]  %s7, 2048, %s68, [#allocation9], 64, 64, 4
    $region33: #{tpu_custom_call.1} parent=1 // pred_fallthru
      _
    // Predicated region
    $region34: #{tpu_custom_call.1} parent=1 // pred_check
      _
    $region35: #{tpu_custom_call.1} parent=1 // pred_check_branch
      %75 = sbr.rel (0) target = $region37
    $region36: #{tpu_custom_call.1} parent=1 // pred_region
      _
    $region37: #{tpu_custom_call.1} parent=1 // pred_fallthru
      _
    // Predicated region
    $region38: #{tpu_custom_call.1} parent=1 // pred_check
      _
    $region39: #{tpu_custom_call.1} parent=1 // pred_check_branch
      %77 = sbr.rel (0) target = $region41
    $region40: #{tpu_custom_call.1} parent=1 // pred_region
      %78 = dma.done [#allocation3], 256
    $region41: #{tpu_custom_call.1} parent=1 // pred_fallthru
      _
    // Predicated region
    $region42: #{tpu_custom_call.1} parent=1 // pred_check
      _
    $region43: #{tpu_custom_call.1} parent=1 // pred_check_branch
      %80 = sbr.rel (0) target = $region45
    $region44: #{tpu_custom_call.1} parent=1 // pred_region
      %81 = dma.done [#allocation6], 2048
    $region45: #{tpu_custom_call.1} parent=1 // pred_fallthru
      _
    // Predicated region
    $region46: #{tpu_custom_call.1} parent=1 // pred_check
      _
    $region47: #{tpu_custom_call.1} parent=1 // pred_check_branch
      %83 = sbr.rel (0) target = $region49
    $region48: #{tpu_custom_call.1} parent=1 // pred_region
      %84 = dma.done [#allocation6], 1024
    $region49: #{tpu_custom_call.1} parent=1 // pred_fallthru
      _
    // Predicated region
    $region50: #{tpu_custom_call.1} parent=1 // pred_check
      _
    $region51: #{tpu_custom_call.1} parent=1 // pred_check_branch
      %86 = sbr.rel (0) target = $region53
    $region52: #{tpu_custom_call.1} parent=1 // pred_region
      %87 = dma.done [#allocation9], 2048
    $region53: #{tpu_custom_call.1} parent=1 // pred_fallthru
      _
    %v89 = vld [vmem:[#allocation2] sm:$0xff]
    %v90 = vld [vmem:[#allocation2 + $0x8] sm:$0xff]
    %v91 = vpack.c.bf16 %v90, %v89
    %v92 = vld [vmem:[#allocation5] sm:$0xff]
    %v93 = vld [vmem:[#allocation5 + $0x8] sm:$0xff]
    %v94 = vld [vmem:[#allocation5 + $0x10] sm:$0xff]
    %v95 = vld [vmem:[#allocation5 + $0x18] sm:$0xff]
    %v96 = vld [vmem:[#allocation5 + $0x20] sm:$0xff]
    %v97 = vld [vmem:[#allocation5 + $0x28] sm:$0xff]
    %v98 = vld [vmem:[#allocation5 + $0x30] sm:$0xff]
    %v99 = vld [vmem:[#allocation5 + $0x38] sm:$0xff]
    %v100 = vld [vmem:[#allocation5 + $0x40] sm:$0xff]
    %v101 = vld [vmem:[#allocation5 + $0x48] sm:$0xff]
    %v102 = vld [vmem:[#allocation5 + $0x50] sm:$0xff]
    %v103 = vld [vmem:[#allocation5 + $0x58] sm:$0xff]
    %v104 = vld [vmem:[#allocation5 + $0x60] sm:$0xff]
    %v105 = vld [vmem:[#allocation5 + $0x68] sm:$0xff]
    %v106 = vld [vmem:[#allocation5 + $0x70] sm:$0xff]
    %v107 = vld [vmem:[#allocation5 + $0x78] sm:$0xff]
    %v108 = vld [vmem:[%s2] sm:$0x3]
    %v110 = vlaneseq
    %v111 = vshrl.u32 %v110, 7
    %v112 = vsub.s32 0, %v111
    %v113 = vrot.slane %v108, %v112
    %v114 = vlaneseq
    %v115 = vshrl.u32 %v114, 7
    %v116 = vsub.s32 1, %v115
    %v117 = vrot.slane %v108, %v116
    %v136 = vunpack.c.l.b16 %v92
    %v137 = vunpack.c.h.b16 %v92
    %v138 = vunpack.c.l.b16 %v93
    %v139 = vunpack.c.h.b16 %v93
    %v140 = vunpack.c.l.b16 %v94
    %v141 = vunpack.c.h.b16 %v94
    %v142 = vunpack.c.l.b16 %v95
    %v143 = vunpack.c.h.b16 %v95
    %v144 = vunpack.c.l.b16 %v96
    %v145 = vunpack.c.h.b16 %v96
    %v146 = vunpack.c.l.b16 %v97
    %v147 = vunpack.c.h.b16 %v97
    %v148 = vunpack.c.l.b16 %v98
    %v149 = vunpack.c.h.b16 %v98
    %v150 = vunpack.c.l.b16 %v99
    %v151 = vunpack.c.h.b16 %v99
    %v152 = vunpack.c.l.b16 %v100
    %v153 = vunpack.c.h.b16 %v100
    %v154 = vunpack.c.l.b16 %v101
    %v155 = vunpack.c.h.b16 %v101
    %v156 = vunpack.c.l.b16 %v102
    %v157 = vunpack.c.h.b16 %v102
    %v158 = vunpack.c.l.b16 %v103
    %v159 = vunpack.c.h.b16 %v103
    %v160 = vunpack.c.l.b16 %v104
    %v161 = vunpack.c.h.b16 %v104
    %v162 = vunpack.c.l.b16 %v105
    %v163 = vunpack.c.h.b16 %v105
    %v164 = vunpack.c.l.b16 %v106
    %v165 = vunpack.c.h.b16 %v106
    %v166 = vunpack.c.l.b16 %v107
    %v167 = vunpack.c.h.b16 %v107
    %v168 = vpack.c.b16 %v138, %v136
    %v169 = vpack.c.b16 %v139, %v137
    %v170 = vpack.c.b16 %v142, %v140
    %v171 = vpack.c.b16 %v143, %v141
    %v172 = vpack.c.b16 %v146, %v144
    %v173 = vpack.c.b16 %v147, %v145
    %v174 = vpack.c.b16 %v150, %v148
    %v175 = vpack.c.b16 %v151, %v149
    %v176 = vpack.c.b16 %v154, %v152
    %v177 = vpack.c.b16 %v155, %v153
    %v178 = vpack.c.b16 %v158, %v156
    %v179 = vpack.c.b16 %v159, %v157
    %v180 = vpack.c.b16 %v162, %v160
    %v181 = vpack.c.b16 %v163, %v161
    %v182 = vpack.c.b16 %v166, %v164
    %v183 = vpack.c.b16 %v167, %v165
    %200 = vmatprep.subr.bf16.mxu0 %v169
    %201 = vmatpush1.bf16.msra.mxu0 %v168
    %202 = vmatprep.subr.bf16.mxu0 %v171
    %203 = vmatpush1.bf16.msra.mxu0 %v170
    %204 = vmatprep.subr.bf16.mxu0 %v173
    %205 = vmatpush1.bf16.msra.mxu0 %v172
    %206 = vmatprep.subr.bf16.mxu0 %v175
    %207 = vmatpush1.bf16.msra.mxu0 %v174
    %208 = vmatprep.subr.bf16.mxu0 %v177
    %209 = vmatpush1.bf16.msra.mxu0 %v176
    %210 = vmatprep.subr.bf16.mxu0 %v179
    %211 = vmatpush1.bf16.msra.mxu0 %v178
    %212 = vmatprep.subr.bf16.mxu0 %v181
    %213 = vmatpush1.bf16.msra.mxu0 %v180
    %214 = vmatprep.subr.bf16.mxu0 %v183
    %215 = vmatpush1.bf16.msra.mxu0 %v182
    %216 = vmatprep.subr.bf16.mxu0 0
    %217 = vmatpush1.bf16.msra.mxu0 0
    %218 = vmatprep.subr.bf16.mxu0 0
    %219 = vmatpush1.bf16.msra.mxu0 0
    %220 = vmatprep.subr.bf16.mxu0 0
    %221 = vmatpush1.bf16.msra.mxu0 0
    %222 = vmatprep.subr.bf16.mxu0 0
    %223 = vmatpush1.bf16.msra.mxu0 0
    %224 = vmatprep.subr.bf16.mxu0 0
    %225 = vmatpush1.bf16.msra.mxu0 0
    %226 = vmatprep.subr.bf16.mxu0 0
    %227 = vmatpush1.bf16.msra.mxu0 0
    %228 = vmatprep.subr.bf16.mxu0 0
    %229 = vmatpush1.bf16.msra.mxu0 0
    %230 = vmatprep.subr.bf16.mxu0 0
    %231 = vmatpush1.bf16.msra.mxu0 0
    %232 = vmatprep.mubr.bf16.mxu0 0
    %233 = vmatmul.mubr.bf16.gmra.mrb[0].mxu0 %v91
    %v234 = vpop.f32.mrb[0].mxu0
    %v235 = vadd.f32 %v113, %v234
    %v236 = vpop.f32.mrb[0].mxu0
    %v237 = vadd.f32 %v117, %v236
    %v238 = vpop.f32.mrb[0].mxu0
    %v239 = vadd.f32 %v113, %v238
    %v240 = vpop.f32.mrb[0].mxu0
    %v241 = vadd.f32 %v117, %v240
    %242 = vdwg.mxu0
    %v243 = vtanh.pop %v235
    %v244 = vtanh.pop %v239
    %v245 = vld [vmem:[#allocation7] sm:$0xf]
    %v246 = vld [vmem:[#allocation7 + $0x4] sm:$0xf]
    %v247 = vld [vmem:[#allocation7 + $0x8] sm:$0xf]
    %v248 = vld [vmem:[#allocation7 + $0xc] sm:$0xf]
    %v249 = vld [vmem:[#allocation7 + $0x10] sm:$0xf]
    %v250 = vld [vmem:[#allocation7 + $0x14] sm:$0xf]
    %v251 = vld [vmem:[#allocation7 + $0x18] sm:$0xf]
    %v252 = vld [vmem:[#allocation7 + $0x1c] sm:$0xf]
    %v253 = vld [vmem:[#allocation7 + $0x20] sm:$0xf]
    %v254 = vld [vmem:[#allocation7 + $0x24] sm:$0xf]
    %v255 = vld [vmem:[#allocation7 + $0x28] sm:$0xf]
    %v256 = vld [vmem:[#allocation7 + $0x2c] sm:$0xf]
    %v257 = vld [vmem:[#allocation7 + $0x30] sm:$0xf]
    %v258 = vld [vmem:[#allocation7 + $0x34] sm:$0xf]
    %v259 = vld [vmem:[#allocation7 + $0x38] sm:$0xf]
    %v260 = vld [vmem:[#allocation7 + $0x3c] sm:$0xf]
    %v261 = vld [vmem:[%s4] sm:$0x1]
    %v262 = vpack.c.bf16 %v244, %v243
    %v264 = vlaneseq
    %v265 = vshrl.u32 %v264, 7
    %v266 = vsub.s32 0, %v265
    %v267 = vrot.slane %v261, %v266
    %v285 = vunpack.c.l.b16 %v245
    %v286 = vunpack.c.l.b16 %v246
    %v287 = vunpack.c.l.b16 %v247
    %v288 = vunpack.c.l.b16 %v248
    %v289 = vunpack.c.l.b16 %v249
    %v290 = vunpack.c.l.b16 %v250
    %v291 = vunpack.c.l.b16 %v251
    %v292 = vunpack.c.l.b16 %v252
    %v293 = vunpack.c.l.b16 %v253
    %v294 = vunpack.c.l.b16 %v254
    %v295 = vunpack.c.l.b16 %v255
    %v296 = vunpack.c.l.b16 %v256
    %v297 = vunpack.c.l.b16 %v257
    %v298 = vunpack.c.l.b16 %v258
    %v299 = vunpack.c.l.b16 %v259
    %v300 = vunpack.c.l.b16 %v260
    %v301 = vpack.c.b16 %v286, %v285
    %v302 = vpack.c.b16 %v288, %v287
    %v303 = vpack.c.b16 %v290, %v289
    %v304 = vpack.c.b16 %v292, %v291
    %v305 = vpack.c.b16 %v294, %v293
    %v306 = vpack.c.b16 %v296, %v295
    %v307 = vpack.c.b16 %v298, %v297
    %v308 = vpack.c.b16 %v300, %v299
    %317 = vmatprep.subr.bf16.mxu0 0
    %318 = vmatpush1.bf16.msra.mxu0 %v301
    %319 = vmatprep.subr.bf16.mxu0 0
    %320 = vmatpush1.bf16.msra.mxu0 %v302
    %321 = vmatprep.subr.bf16.mxu0 0
    %322 = vmatpush1.bf16.msra.mxu0 %v303
    %323 = vmatprep.subr.bf16.mxu0 0
    %324 = vmatpush1.bf16.msra.mxu0 %v304
    %325 = vmatprep.subr.bf16.mxu0 0
    %326 = vmatpush1.bf16.msra.mxu0 %v305
    %327 = vmatprep.subr.bf16.mxu0 0
    %328 = vmatpush1.bf16.msra.mxu0 %v306
    %329 = vmatprep.subr.bf16.mxu0 0
    %330 = vmatpush1.bf16.msra.mxu0 %v307
    %331 = vmatprep.subr.bf16.mxu0 0
    %332 = vmatpush1.bf16.msra.mxu0 %v308
    %333 = vmatprep.subr.bf16.mxu0 0
    %334 = vmatpush1.bf16.msra.mxu0 0
    %335 = vmatprep.subr.bf16.mxu0 0
    %336 = vmatpush1.bf16.msra.mxu0 0
    %337 = vmatprep.subr.bf16.mxu0 0
    %338 = vmatpush1.bf16.msra.mxu0 0
    %339 = vmatprep.subr.bf16.mxu0 0
    %340 = vmatpush1.bf16.msra.mxu0 0
    %341 = vmatprep.subr.bf16.mxu0 0
    %342 = vmatpush1.bf16.msra.mxu0 0
    %343 = vmatprep.subr.bf16.mxu0 0
    %344 = vmatpush1.bf16.msra.mxu0 0
    %345 = vmatprep.subr.bf16.mxu0 0
    %346 = vmatpush1.bf16.msra.mxu0 0
    %347 = vmatprep.subr.bf16.mxu0 0
    %348 = vmatpush1.bf16.msra.mxu0 0
    %349 = vmatprep.mubr.bf16.mxu0 0
    %350 = vmatmul.mubr.bf16.gmra.mrb[0].mxu0 %v262
    %v351 = vpop.f32.mrb[0].mxu0
    %v352 = vadd.f32 %v267, %v351
    %v353 = vpop.f32.mrb[0].mxu0
    %v354 = vpop.f32.mrb[0].mxu0
    %v355 = vadd.f32 %v267, %v354
    %v356 = vpop.f32.mrb[0].mxu0
    %357 = vdwg.mxu0
    %v358 = vld [vmem:[%s5] sm:$0x1]
    %v359 = vld [vmem:[%s6] sm:$0x1]
    %360 = vadd.xlane.f32.xlu0 %v352
    %v361 = vpop.xlane.xlu0 %360
    %362 = vadd.xlane.f32.xlu0 %v355
    %v363 = vpop.xlane.xlu0 %362
    %v364 = vmul.f32 %v361, 0.015625
    %v365 = vmul.f32 %v363, 0.015625
    %v366 = vsub.f32 %v352, %v364
    %v367 = vsub.f32 %v355, %v365
    %v368 = vlaneseq
    %v369 = vand.u32 %v368, 127
    %vm370 = vcmp.lt.s32.totalorder %v369, 64
    %v371 = vsel %vm370, %v366, 0.0
    %v372 = vsel %vm370, %v367, 0.0
    %v373 = vmul.f32 %v371, %v371
    %v374 = vmul.f32 %v372, %v372
    %375 = vadd.xlane.f32.xlu0 %v373
    %v376 = vpop.xlane.xlu0 %375
    %377 = vadd.xlane.f32.xlu0 %v374
    %v378 = vpop.xlane.xlu0 %377
    %v379 = vmul.f32 %v376, 0.015625
    %v380 = vmul.f32 %v378, 0.015625
    %v381 = vadd.f32 %v379, 1e-05
    %v382 = vadd.f32 %v380, 1e-05
    %v383 = vrsqrt.pop %v381
    %v384 = vrsqrt.pop %v382
    %v385 = vmul.f32 %v366, %v383
    %v386 = vmul.f32 %v367, %v384
    %v388 = vlaneseq
    %v389 = vshrl.u32 %v388, 7
    %v390 = vsub.s32 0, %v389
    %v391 = vrot.slane %v358, %v390
    %v393 = vmul.f32 %v385, %v391
    %v394 = vmul.f32 %v386, %v391
    %v396 = vlaneseq
    %v397 = vshrl.u32 %v396, 7
    %v398 = vsub.s32 0, %v397
    %v399 = vrot.slane %v359, %v398
    %v401 = vadd.f32 %v393, %v399
    %v402 = vadd.f32 %v394, %v399
    %v403 = vmul.f32 %v401, 0.5
    %v404 = vmul.f32 %v402, 0.5
    %v405 = vmul.f32 %v401, 0.70710677
    %v406 = vmul.f32 %v402, 0.70710677
    %v407 = verf.f32.pop %v405
    %v408 = verf.f32.pop %v406
    %v409 = vadd.f32 %v407, 1.0
    %v410 = vadd.f32 %v408, 1.0
    %v411 = vmul.f32 %v403, %v409
    %v412 = vmul.f32 %v404, %v410
    %v413 = vpack.c.bf16 %v412, %v411
    %v414 = vmax.f32 %v237, 0.0
    %v415 = vmax.f32 %v241, 0.0
    %v416 = vpack.c.bf16 %v415, %v414
    %v417 = vld [vmem:[#allocation8] sm:$0xf]
    %v418 = vld [vmem:[#allocation8 + $0x4] sm:$0xf]
    %v419 = vld [vmem:[#allocation8 + $0x8] sm:$0xf]
    %v420 = vld [vmem:[#allocation8 + $0xc] sm:$0xf]
    %v421 = vld [vmem:[#allocation8 + $0x10] sm:$0xf]
    %v422 = vld [vmem:[#allocation8 + $0x14] sm:$0xf]
    %v423 = vld [vmem:[#allocation8 + $0x18] sm:$0xf]
    %v424 = vld [vmem:[#allocation8 + $0x1c] sm:$0xf]
    %v425 = vld [vmem:[#allocation8 + $0x20] sm:$0xf]
    %v426 = vld [vmem:[#allocation8 + $0x24] sm:$0xf]
    %v427 = vld [vmem:[#allocation8 + $0x28] sm:$0xf]
    %v428 = vld [vmem:[#allocation8 + $0x2c] sm:$0xf]
    %v429 = vld [vmem:[#allocation8 + $0x30] sm:$0xf]
    %v430 = vld [vmem:[#allocation8 + $0x34] sm:$0xf]
    %v431 = vld [vmem:[#allocation8 + $0x38] sm:$0xf]
    %v432 = vld [vmem:[#allocation8 + $0x3c] sm:$0xf]
    %v433 = vld [vmem:[#allocation8 + $0x40] sm:$0xf]
    %v434 = vld [vmem:[#allocation8 + $0x44] sm:$0xf]
    %v435 = vld [vmem:[#allocation8 + $0x48] sm:$0xf]
    %v436 = vld [vmem:[#allocation8 + $0x4c] sm:$0xf]
    %v437 = vld [vmem:[#allocation8 + $0x50] sm:$0xf]
    %v438 = vld [vmem:[#allocation8 + $0x54] sm:$0xf]
    %v439 = vld [vmem:[#allocation8 + $0x58] sm:$0xf]
    %v440 = vld [vmem:[#allocation8 + $0x5c] sm:$0xf]
    %v441 = vld [vmem:[#allocation8 + $0x60] sm:$0xf]
    %v442 = vld [vmem:[#allocation8 + $0x64] sm:$0xf]
    %v443 = vld [vmem:[#allocation8 + $0x68] sm:$0xf]
    %v444 = vld [vmem:[#allocation8 + $0x6c] sm:$0xf]
    %v445 = vld [vmem:[#allocation8 + $0x70] sm:$0xf]
    %v446 = vld [vmem:[#allocation8 + $0x74] sm:$0xf]
    %v447 = vld [vmem:[#allocation8 + $0x78] sm:$0xf]
    %v448 = vld [vmem:[#allocation8 + $0x7c] sm:$0xf]
    %v449 = vld [vmem:[%s8] sm:$0x1]
    %v451 = vlaneseq
    %v452 = vshrl.u32 %v451, 7
    %v453 = vsub.s32 0, %v452
    %v454 = vrot.slane %v449, %v453
    %v488 = vunpack.c.l.b16 %v417
    %v489 = vunpack.c.l.b16 %v418
    %v490 = vunpack.c.l.b16 %v419
    %v491 = vunpack.c.l.b16 %v420
    %v492 = vunpack.c.l.b16 %v421
    %v493 = vunpack.c.l.b16 %v422
    %v494 = vunpack.c.l.b16 %v423
    %v495 = vunpack.c.l.b16 %v424
    %v496 = vunpack.c.l.b16 %v425
    %v497 = vunpack.c.l.b16 %v426
    %v498 = vunpack.c.l.b16 %v427
    %v499 = vunpack.c.l.b16 %v428
    %v500 = vunpack.c.l.b16 %v429
    %v501 = vunpack.c.l.b16 %v430
    %v502 = vunpack.c.l.b16 %v431
    %v503 = vunpack.c.l.b16 %v432
    %v504 = vunpack.c.l.b16 %v433
    %v505 = vunpack.c.l.b16 %v434
    %v506 = vunpack.c.l.b16 %v435
    %v507 = vunpack.c.l.b16 %v436
    %v508 = vunpack.c.l.b16 %v437
    %v509 = vunpack.c.l.b16 %v438
    %v510 = vunpack.c.l.b16 %v439
    %v511 = vunpack.c.l.b16 %v440
    %v512 = vunpack.c.l.b16 %v441
    %v513 = vunpack.c.l.b16 %v442
    %v514 = vunpack.c.l.b16 %v443
    %v515 = vunpack.c.l.b16 %v444
    %v516 = vunpack.c.l.b16 %v445
    %v517 = vunpack.c.l.b16 %v446
    %v518 = vunpack.c.l.b16 %v447
    %v519 = vunpack.c.l.b16 %v448
    %v520 = vpack.c.b16 %v489, %v488
    %v521 = vpack.c.b16 %v491, %v490
    %v522 = vpack.c.b16 %v493, %v492
    %v523 = vpack.c.b16 %v495, %v494
    %v524 = vpack.c.b16 %v497, %v496
    %v525 = vpack.c.b16 %v499, %v498
    %v526 = vpack.c.b16 %v501, %v500
    %v527 = vpack.c.b16 %v503, %v502
    %v528 = vpack.c.b16 %v505, %v504
    %v529 = vpack.c.b16 %v507, %v506
    %v530 = vpack.c.b16 %v509, %v508
    %v531 = vpack.c.b16 %v511, %v510
    %v532 = vpack.c.b16 %v513, %v512
    %v533 = vpack.c.b16 %v515, %v514
    %v534 = vpack.c.b16 %v517, %v516
    %v535 = vpack.c.b16 %v519, %v518
    %552 = vmatprep.subr.bf16.mxu0 0
    %553 = vmatpush1.bf16.msra.mxu0 %v520
    %554 = vmatprep.subr.bf16.mxu0 0
    %555 = vmatpush1.bf16.msra.mxu0 %v521
    %556 = vmatprep.subr.bf16.mxu0 0
    %557 = vmatpush1.bf16.msra.mxu0 %v522
    %558 = vmatprep.subr.bf16.mxu0 0
    %559 = vmatpush1.bf16.msra.mxu0 %v523
    %560 = vmatprep.subr.bf16.mxu0 0
    %561 = vmatpush1.bf16.msra.mxu0 %v524
    %562 = vmatprep.subr.bf16.mxu0 0
    %563 = vmatpush1.bf16.msra.mxu0 %v525
    %564 = vmatprep.subr.bf16.mxu0 0
    %565 = vmatpush1.bf16.msra.mxu0 %v526
    %566 = vmatprep.subr.bf16.mxu0 0
    %567 = vmatpush1.bf16.msra.mxu0 %v527
    %568 = vmatprep.subr.bf16.mxu0 0
    %569 = vmatpush1.bf16.msra.mxu0 %v528
    %570 = vmatprep.subr.bf16.mxu0 0
    %571 = vmatpush1.bf16.msra.mxu0 %v529
    %572 = vmatprep.subr.bf16.mxu0 0
    %573 = vmatpush1.bf16.msra.mxu0 %v530
    %574 = vmatprep.subr.bf16.mxu0 0
    %575 = vmatpush1.bf16.msra.mxu0 %v531
    %576 = vmatprep.subr.bf16.mxu0 0
    %577 = vmatpush1.bf16.msra.mxu0 %v532
    %578 = vmatprep.subr.bf16.mxu0 0
    %579 = vmatpush1.bf16.msra.mxu0 %v533
    %580 = vmatprep.subr.bf16.mxu0 0
    %581 = vmatpush1.bf16.msra.mxu0 %v534
    %582 = vmatprep.subr.bf16.mxu0 0
    %583 = vmatpush1.bf16.msra.mxu0 %v535
    %584 = vmatprep.mubr.bf16.mxu0 %v416
    %585 = vmatmul.mubr.bf16.gmra.mrb[0].mxu0 %v413
    %v586 = vpop.f32.mrb[0].mxu0
    %v587 = vadd.f32 %v454, %v586
    %v588 = vpop.f32.mrb[0].mxu0
    %v589 = vpop.f32.mrb[0].mxu0
    %v590 = vadd.f32 %v454, %v589
    %v591 = vpop.f32.mrb[0].mxu0
    %592 = vdwg.mxu0
    %593 = vst [vmem:[#allocation10] sm:$0xff] %v587
    %594 = vst [vmem:[#allocation10 + $0x8] sm:$0xff] %v590
    // Predicated region
    $region54: #{tpu_custom_call.1} parent=1 // pred_check
      _
    $region55: #{tpu_custom_call.1} parent=1 // pred_check_branch
      %596 = sbr.rel (0) target = $region57
    $region56: #{tpu_custom_call.1} parent=1 // pred_region
      %s598 = ssub.s32 256, 256
      %599 = vsyncadd [#allocation4], %s598
      %s600 = sshll.u32 [#allocation10], 4
      %s601 = int_to_ptr.vmem [resolvable:$true] %s600
      %606 = dma.vmem_to_hbm [thread:$0]  %s601, 256, %s9, [#allocation4], 128, 128, 8
    $region57: #{tpu_custom_call.1} parent=1 // pred_fallthru
      _
    // Predicated region
    $region58: #{tpu_custom_call.1} parent=1 // pred_check
      _
    $region59: #{tpu_custom_call.1} parent=1 // pred_check_branch
      %608 = sbr.rel (0) target = $region61
    $region60: #{tpu_custom_call.1} parent=1 // pred_region
      %609 = dma.done [#allocation4], 256
    $region61: #{tpu_custom_call.1} parent=1 // pred_fallthru
      _
    %610 = vsyncpa [#allocation3], 1
    %611 = vsyncpa [#allocation6], 1
    %612 = vsyncpa [#allocation9], 1
    %613 = vsyncpa [#allocation4], 1

</llo_original>
